<compile_context>
chip_gen: v5e
topology: v5e:2x2
jax: 0.10.0
libtpu: 0.0.40
codegen_flags: <defaults>
</compile_context>

<pallas_src>
import functools

import jax
import jax.numpy as jnp
from jax.experimental import pallas as pl
from jax.experimental.pallas import tpu as pltpu


_SQRT1_2 = 0.7071067811865476


def _erf_approx(z):
    # Abramowitz & Stegun 7.1.26 rational approximation (max abs err ~1.5e-7).
    # The divide is an EUP approximate reciprocal so it stays off the VALU slot.
    a1, a2, a3, a4, a5 = 0.254829592, -0.284496736, 1.421413741, -1.453152027, 1.061405429
    p = 0.3275911
    s = jnp.where(z >= 0.0, 1.0, -1.0)
    az = jnp.abs(z)
    t = pl.reciprocal(1.0 + p * az, approx=True)
    poly = ((((a5 * t + a4) * t + a3) * t + a2) * t + a1) * t
    return s * (1.0 - poly * jnp.exp(-az * az))


def _gelu_erf(h):
    # Matches PyTorch nn.GELU() default (erf-based, not the tanh approximation).
    return 0.5 * h * (1.0 + _erf_approx(h * _SQRT1_2))


def _mixffn_kernel(x_ref, w1_ref, b1_ref, dw_ref, dwb_ref, w2_ref, b2_ref, out_ref,
                   *, seq_len):
    tm = x_ref.shape[0]                          # rows in this slab (whole sequences)

    # linear1 (1x1 Conv1d) with the groups=C expansion folded into the weight:
    # (TM, C)bf16 @ (C, CE)bf16 -> f32 on the MXU, then f32 bias add.
    y = jnp.dot(x_ref[...], w1_ref[...], preferred_element_type=jnp.float32)
    y = y + b1_ref[...]                          # (TM, CE) f32

    # Depthwise k=3 'same' conv along L: XLU rolls along the row axis, with a per-sequence
    # boundary mask implementing the zero padding (also correct at batch boundaries inside
    # the slab because slabs always contain whole sequences).
    pos = jax.lax.broadcasted_iota(jnp.int32, (tm, 1), 0) % seq_len
    y_prev = jnp.where(pos == 0, 0.0, pltpu.roll(y, 1, axis=0))             # y[l-1]
    y_next = jnp.where(pos == seq_len - 1, 0.0, pltpu.roll(y, tm - 1, axis=0))  # y[l+1]

    dw = dw_ref[...]                                                        # (3, CE) f32
    h = y_prev * dw[0:1, :] + y * dw[1:2, :] + y_next * dw[2:3, :] + dwb_ref[...]

    h = _gelu_erf(h)                                                         # f32

    # linear2 (1x1 Conv1d): (TM, CE)bf16 @ (CE, C)bf16 -> f32 on the MXU.
    out = jnp.dot(h.astype(jnp.bfloat16), w2_ref[...],
                  preferred_element_type=jnp.float32)
    out_ref[...] = (out + b2_ref[...]).astype(out_ref.dtype)


def mixffn(x, params, *, expansion_ratio, rows_per_tile_target=512):
    """Pallas implementation of MixFFN.forward for x of shape (B, L, C)."""
    B, L, C = x.shape
    E = expansion_ratio
    CE = C * E

    # --- trace-time weight re-layout (weights only; no activation traffic) ---
    w1 = params["w1"][:, :, 0]                                   # Conv1d(C, C, 1) -> (C, C)
    # Fold groups=C expansion: depthwise output channel o reads linear1 channel o // E,
    # so linear1 becomes one lane-dense (C, CE) matmul and no lane-axis repeat is needed.
    w1e = jnp.repeat(w1, E, axis=0).T.astype(jnp.bfloat16)       # (C, CE) bf16 for the MXU
    b1e = jnp.repeat(params["b1"], E).reshape(1, CE)             # (1, CE) f32
    dw = params["w_dw"][:, 0, :].T                               # (3, CE): dw[k, o] = w_dw[o, 0, k]
    dwb = params["b_dw"].reshape(1, CE)
    w2t = params["w2"][:, :, 0].T.astype(jnp.bfloat16)           # (CE, C) bf16 for the MXU
    b2 = params["b2"].reshape(1, C)

    # --- row tiling: flatten (B, L) -> rows; each grid step gets a (TM, C) slab made of
    # whole sequences so the k=3 conv never needs a cross-tile halo. ---
    divisors = [d for d in range(1, B + 1) if B % d == 0]
    ok = [d for d in divisors if (d * L) % 8 == 0 or d == B]     # sublane-aligned tile
    fit = [d for d in ok if d * L <= rows_per_tile_target]
    bb = max(fit) if fit else min(ok)
    tm = bb * L
    num_tiles = B // bb

    x_flat = x.reshape(B * L, C).astype(jnp.bfloat16)            # bf16 halves x DMA traffic

    def full(shape):
        return pl.BlockSpec(shape, lambda i: (0,) * len(shape))

    grid_spec = pltpu.PrefetchScalarGridSpec(
        num_scalar_prefetch=0,
        grid=(num_tiles,),
        in_specs=[
            pl.BlockSpec((tm, C), lambda i: (i, 0)),
            full((C, CE)), full((1, CE)),
            full((3, CE)), full((1, CE)),
            full((CE, C)), full((1, C)),
        ],
        out_specs=pl.BlockSpec((tm, C), lambda i: (i, 0)),
    )

    out_flat = pl.pallas_call(
        functools.partial(_mixffn_kernel, seq_len=L),
        out_shape=jax.ShapeDtypeStruct((B * L, C), x.dtype),
        grid_spec=grid_spec,
        compiler_params=pltpu.CompilerParams(
            dimension_semantics=("parallel",),        # row-slab axis shards across TCs (v7x)
            vmem_limit_bytes=48 * 1024 * 1024,        # explicit budget (v7x: 64 MiB physical)
        ),
    )(x_flat, w1e, b1e, dw, dwb, w2t, b2)

    return out_flat.reshape(B, L, C)


def reference_f32(x, params):
    """Pure-JAX f32 replica of the PyTorch forward (exact erf GELU)."""
    B, L, C = x.shape
    xr = jnp.transpose(x, (0, 2, 1))                             # B C L
    y = jax.lax.conv_general_dilated(
        xr, params["w1"], window_strides=(1,), padding=[(0, 0)],
        dimension_numbers=("NCH", "OIH", "NCH")) + params["b1"][None, :, None]
    h = jax.lax.conv_general_dilated(
        y, params["w_dw"], window_strides=(1,), padding=[(1, 1)],
        dimension_numbers=("NCH", "OIH", "NCH"),
        feature_group_count=C) + params["b_dw"][None, :, None]
    h = jax.nn.gelu(h, approximate=False)
    o = jax.lax.conv_general_dilated(
        h, params["w2"], window_strides=(1,), padding=[(0, 0)],
        dimension_numbers=("NCH", "OIH", "NCH")) + params["b2"][None, :, None]
    return jnp.transpose(o, (0, 2, 1))                           # B L C


def reference_bf16(x, params, *, expansion_ratio):
    """Replicates the kernel's bf16-MXU numerics in plain JAX (exact erf GELU), isolating
    tiling / halo / weight-fold correctness from bf16 rounding."""
    B, L, C = x.shape
    E = expansion_ratio
    CE = C * E
    bf = jnp.bfloat16
    w1e = jnp.repeat(params["w1"][:, :, 0], E, axis=0).T.astype(bf)
    b1e = jnp.repeat(params["b1"], E)
    dw = params["w_dw"][:, 0, :].T
    w2t = params["w2"][:, :, 0].T.astype(bf)
    y = jnp.dot(x.astype(bf).reshape(B * L, C), w1e,
                preferred_element_type=jnp.float32) + b1e[None, :]
    y = y.reshape(B, L, CE)
    zp = jnp.zeros((B, 1, CE), jnp.float32)
    y_prev = jnp.concatenate([zp, y[:, :-1]], axis=1)
    y_next = jnp.concatenate([y[:, 1:], zp], axis=1)
    h = (y_prev * dw[0][None, None, :] + y * dw[1][None, None, :]
         + y_next * dw[2][None, None, :] + params["b_dw"][None, None, :])
    h = jax.nn.gelu(h, approximate=False)
    o = jnp.dot(h.astype(bf).reshape(B * L, CE), w2t,
                preferred_element_type=jnp.float32) + params["b2"][None, :]
    return o.reshape(B, L, C)


if __name__ == "__main__":
    B, L, C = 2, 16, 32          # batch, sequence, emb_dim
    E = 4                        # expansion ratio -> hidden = 128 (lane-dense)
    CE = C * E

    key = jax.random.PRNGKey(0)
    ks = jax.random.split(key, 8)
    params = {
        "w1": 0.2 * jax.random.normal(ks[0], (C, C, 1), jnp.float32),      # Conv1d(C, C, 1)
        "b1": 0.1 * jax.random.normal(ks[1], (C,), jnp.float32),
        "w_dw": 0.2 * jax.random.normal(ks[2], (CE, 1, 3), jnp.float32),   # Conv1d(C, CE, 3, groups=C)
        "b_dw": 0.1 * jax.random.normal(ks[3], (CE,), jnp.float32),
        "w2": 0.2 * jax.random.normal(ks[4], (C, CE, 1), jnp.float32),     # Conv1d(CE, C, 1)
        "b2": 0.1 * jax.random.normal(ks[5], (C,), jnp.float32),
    }
    x = jax.random.normal(ks[6], (B, L, C), jnp.float32)

    out = mixffn(x, params, expansion_ratio=E)
    jax.block_until_ready(out)

    # Tight check vs a bf16-MXU-emulating reference: only the erf rational approximation
    # (~1.5e-7) and the EUP approximate reciprocal differ from the kernel.
    ref_emu = reference_bf16(x, params, expansion_ratio=E)
    err_emu = float(jnp.max(jnp.abs(out - ref_emu)))
    assert jnp.allclose(out, ref_emu, rtol=1e-2, atol=1e-2), err_emu

    # End-to-end check vs the f32 PyTorch-equivalent forward; tolerance widened for the
    # bf16 MXU inputs (the module semantics are otherwise preserved).
    ref = reference_f32(x, params)
    err = float(jnp.max(jnp.abs(out - ref)))
    assert jnp.allclose(out, ref, rtol=5e-2, atol=5e-2), err

    print("KERNEL_OK")
</pallas_src>

<mosaic_0001>
module attributes {stable_mosaic.version = 11 : i64} {
  func.func @_mixffn_kernel(%arg0: i32, %arg1: memref<32x32xbf16, #tpu.memory_space<vmem>>, %arg2: memref<32x128xbf16, #tpu.memory_space<vmem>>, %arg3: memref<1x128xf32, #tpu.memory_space<vmem>>, %arg4: memref<3x128xf32, #tpu.memory_space<vmem>>, %arg5: memref<1x128xf32, #tpu.memory_space<vmem>>, %arg6: memref<128x32xbf16, #tpu.memory_space<vmem>>, %arg7: memref<1x32xf32, #tpu.memory_space<vmem>>, %arg8: memref<32x32xf32, #tpu.memory_space<vmem>>) attributes {dimension_semantics = [#tpu.dimension_semantics<parallel>], iteration_bounds = array<i64: 1>, scalar_prefetch = 0 : i64, scratch_operands = 0 : i64, tpu.core_type = #tpu.core_type<tc>, window_params = [{transform_indices = @transform_0, window_bounds = array<i64: 32, 32>}, {pipeline_mode = #tpu.pipeline_mode<synchronous>, transform_indices = @transform_1, window_bounds = array<i64: 32, 128>}, {pipeline_mode = #tpu.pipeline_mode<synchronous>, transform_indices = @transform_2, window_bounds = array<i64: 1, 128>}, {pipeline_mode = #tpu.pipeline_mode<synchronous>, transform_indices = @transform_3, window_bounds = array<i64: 3, 128>}, {pipeline_mode = #tpu.pipeline_mode<synchronous>, transform_indices = @transform_4, window_bounds = array<i64: 1, 128>}, {pipeline_mode = #tpu.pipeline_mode<synchronous>, transform_indices = @transform_5, window_bounds = array<i64: 128, 32>}, {pipeline_mode = #tpu.pipeline_mode<synchronous>, transform_indices = @transform_6, window_bounds = array<i64: 1, 32>}, {transform_indices = @transform_7, window_bounds = array<i64: 32, 32>}]} {
    %c0 = arith.constant 0 : index
    %c0_0 = arith.constant 0 : index
    %0 = vector.load %arg1[%c0, %c0_0] : memref<32x32xbf16, #tpu.memory_space<vmem>>, vector<32x32xbf16>
    %c0_1 = arith.constant 0 : index
    %c0_2 = arith.constant 0 : index
    %1 = vector.load %arg2[%c0_1, %c0_2] : memref<32x128xbf16, #tpu.memory_space<vmem>>, vector<32x128xbf16>
    %cst = arith.constant dense<0.000000e+00> : vector<32x128xf32>
    %2 = tpu.matmul %0, %1, %cst {dimension_numbers = #tpu.dot_dimension_numbers<[1], [0], [0], [1], [0, 0, 1, 1], [], []>} : vector<32x32xbf16>, vector<32x128xbf16>, vector<32x128xf32> -> vector<32x128xf32>
    %c0_3 = arith.constant 0 : index
    %c0_4 = arith.constant 0 : index
    %3 = vector.load %arg3[%c0_3, %c0_4] : memref<1x128xf32, #tpu.memory_space<vmem>>, vector<1x128xf32>
    %4 = vector.broadcast %3 : vector<1x128xf32> to vector<32x128xf32>
    %5 = arith.addf %2, %4 : vector<32x128xf32>
    %6 = tpu.iota {dimensions = array<i32: 0>} : vector<32x1xi32>
    %c16_i32 = arith.constant 16 : i32
    %c0_i32 = arith.constant 0 : i32
    %7 = arith.cmpi eq, %c16_i32, %c0_i32 : i32
    %c1_i32 = arith.constant 1 : i32
    %8 = arith.select %7, %c1_i32, %c16_i32 : i32
    %9 = vector.broadcast %8 : i32 to vector<32x1xi32>
    %10 = arith.remsi %6, %9 : vector<32x1xi32>
    %c0_i32_5 = arith.constant 0 : i32
    %11 = vector.broadcast %c0_i32_5 : i32 to vector<32x1xi32>
    %12 = arith.cmpi ne, %10, %11 : vector<32x1xi32>
    %c0_i32_6 = arith.constant 0 : i32
    %13 = vector.broadcast %c0_i32_6 : i32 to vector<32x1xi32>
    %14 = arith.cmpi slt, %10, %13 : vector<32x1xi32>
    %c0_i32_7 = arith.constant 0 : i32
    %15 = arith.cmpi slt, %8, %c0_i32_7 : i32
    %16 = vector.broadcast %15 : i1 to vector<32x1xi1>
    %17 = vector.broadcast %16 : vector<32x1xi1> to vector<32x1xi1>
    %18 = arith.xori %14, %17 : vector<32x1xi1>
    %19 = arith.andi %18, %12 : vector<32x1xi1>
    %20 = vector.broadcast %8 : i32 to vector<32x1xi32>
    %21 = arith.addi %10, %20 : vector<32x1xi32>
    %22 = arith.select %19, %21, %10 : vector<32x1xi1>, vector<32x1xi32>
    %c0_i32_8 = arith.constant 0 : i32
    %23 = vector.broadcast %c0_i32_8 : i32 to vector<32x1xi32>
    %24 = arith.cmpi eq, %22, %23 : vector<32x1xi32>
    %c1_i32_9 = arith.constant 1 : i32
    %25 = tpu.dynamic_rotate %5 by %c1_i32_9 dim 0 : vector<32x128xf32>, i32 -> vector<32x128xf32>
    %cst_10 = arith.constant 0.000000e+00 : f32
    %26 = vector.shape_cast %24 : vector<32x1xi1> to vector<32x1xi1>
    %27 = vector.broadcast %26 : vector<32x1xi1> to vector<32x128xi1>
    %28 = vector.broadcast %cst_10 : f32 to vector<32x128xf32>
    %29 = arith.select %27, %28, %25 : vector<32x128xi1>, vector<32x128xf32>
    %c15_i32 = arith.constant 15 : i32
    %30 = vector.broadcast %c15_i32 : i32 to vector<32x1xi32>
    %31 = arith.cmpi eq, %22, %30 : vector<32x1xi32>
    %c31_i32 = arith.constant 31 : i32
    %32 = tpu.dynamic_rotate %5 by %c31_i32 dim 0 : vector<32x128xf32>, i32 -> vector<32x128xf32>
    %cst_11 = arith.constant 0.000000e+00 : f32
    %33 = vector.shape_cast %31 : vector<32x1xi1> to vector<32x1xi1>
    %34 = vector.broadcast %33 : vector<32x1xi1> to vector<32x128xi1>
    %35 = vector.broadcast %cst_11 : f32 to vector<32x128xf32>
    %36 = arith.select %34, %35, %32 : vector<32x128xi1>, vector<32x128xf32>
    %c0_12 = arith.constant 0 : index
    %c0_13 = arith.constant 0 : index
    %37 = vector.load %arg4[%c0_12, %c0_13] : memref<3x128xf32, #tpu.memory_space<vmem>>, vector<3x128xf32>
    %38 = vector.extract_strided_slice %37 {offsets = [0, 0], sizes = [1, 128], strides = [1, 1]} : vector<3x128xf32> to vector<1x128xf32>
    %39 = vector.broadcast %38 : vector<1x128xf32> to vector<32x128xf32>
    %40 = arith.mulf %29, %39 : vector<32x128xf32>
    %41 = vector.extract_strided_slice %37 {offsets = [1, 0], sizes = [1, 128], strides = [1, 1]} : vector<3x128xf32> to vector<1x128xf32>
    %42 = vector.broadcast %41 : vector<1x128xf32> to vector<32x128xf32>
    %43 = arith.mulf %5, %42 : vector<32x128xf32>
    %44 = arith.addf %40, %43 : vector<32x128xf32>
    %45 = vector.extract_strided_slice %37 {offsets = [2, 0], sizes = [1, 128], strides = [1, 1]} : vector<3x128xf32> to vector<1x128xf32>
    %46 = vector.broadcast %45 : vector<1x128xf32> to vector<32x128xf32>
    %47 = arith.mulf %36, %46 : vector<32x128xf32>
    %48 = arith.addf %44, %47 : vector<32x128xf32>
    %c0_14 = arith.constant 0 : index
    %c0_15 = arith.constant 0 : index
    %49 = vector.load %arg5[%c0_14, %c0_15] : memref<1x128xf32, #tpu.memory_space<vmem>>, vector<1x128xf32>
    %50 = vector.broadcast %49 : vector<1x128xf32> to vector<32x128xf32>
    %51 = arith.addf %48, %50 : vector<32x128xf32>
    %cst_16 = arith.constant 5.000000e-01 : f32
    %52 = vector.broadcast %cst_16 : f32 to vector<32x128xf32>
    %53 = arith.mulf %52, %51 : vector<32x128xf32>
    %cst_17 = arith.constant 0.707106769 : f32
    %54 = vector.broadcast %cst_17 : f32 to vector<32x128xf32>
    %55 = arith.mulf %51, %54 : vector<32x128xf32>
    %cst_18 = arith.constant 0.000000e+00 : f32
    %56 = vector.broadcast %cst_18 : f32 to vector<32x128xf32>
    %57 = arith.cmpf oge, %55, %56 : vector<32x128xf32>
    %cst_19 = arith.constant 1.000000e+00 : f32
    %cst_20 = arith.constant -1.000000e+00 : f32
    %58 = vector.broadcast %cst_19 : f32 to vector<32x128xf32>
    %59 = vector.broadcast %cst_20 : f32 to vector<32x128xf32>
    %60 = arith.select %57, %58, %59 : vector<32x128xi1>, vector<32x128xf32>
    %61 = math.absf %55 : vector<32x128xf32>
    %cst_21 = arith.constant 0.327591091 : f32
    %62 = vector.broadcast %cst_21 : f32 to vector<32x128xf32>
    %63 = arith.mulf %62, %61 : vector<32x128xf32>
    %cst_22 = arith.constant 1.000000e+00 : f32
    %64 = vector.broadcast %cst_22 : f32 to vector<32x128xf32>
    %65 = arith.addf %64, %63 : vector<32x128xf32>
    %66 = tpu.reciprocal %65 {approx = true} : vector<32x128xf32> -> vector<32x128xf32>
    %cst_23 = arith.constant 1.06140542 : f32
    %67 = vector.broadcast %cst_23 : f32 to vector<32x128xf32>
    %68 = arith.mulf %67, %66 : vector<32x128xf32>
    %cst_24 = arith.constant -1.45315206 : f32
    %69 = vector.broadcast %cst_24 : f32 to vector<32x128xf32>
    %70 = arith.addf %68, %69 : vector<32x128xf32>
    %71 = arith.mulf %70, %66 : vector<32x128xf32>
    %cst_25 = arith.constant 1.42141378 : f32
    %72 = vector.broadcast %cst_25 : f32 to vector<32x128xf32>
    %73 = arith.addf %71, %72 : vector<32x128xf32>
    %74 = arith.mulf %73, %66 : vector<32x128xf32>
    %cst_26 = arith.constant -0.284496725 : f32
    %75 = vector.broadcast %cst_26 : f32 to vector<32x128xf32>
    %76 = arith.addf %74, %75 : vector<32x128xf32>
    %77 = arith.mulf %76, %66 : vector<32x128xf32>
    %cst_27 = arith.constant 0.254829586 : f32
    %78 = vector.broadcast %cst_27 : f32 to vector<32x128xf32>
    %79 = arith.addf %77, %78 : vector<32x128xf32>
    %80 = arith.mulf %79, %66 : vector<32x128xf32>
    %cst_28 = arith.constant 0.000000e+00 : f32
    %81 = vector.broadcast %cst_28 : f32 to vector<32x128xf32>
    %82 = arith.subf %81, %61 : vector<32x128xf32>
    %83 = arith.mulf %82, %61 : vector<32x128xf32>
    %84 = math.exp %83 : vector<32x128xf32>
    %85 = arith.mulf %80, %84 : vector<32x128xf32>
    %cst_29 = arith.constant 1.000000e+00 : f32
    %86 = vector.broadcast %cst_29 : f32 to vector<32x128xf32>
    %87 = arith.subf %86, %85 : vector<32x128xf32>
    %88 = arith.mulf %60, %87 : vector<32x128xf32>
    %cst_30 = arith.constant 1.000000e+00 : f32
    %89 = vector.broadcast %cst_30 : f32 to vector<32x128xf32>
    %90 = arith.addf %89, %88 : vector<32x128xf32>
    %91 = arith.mulf %53, %90 : vector<32x128xf32>
    %92 = arith.truncf %91 : vector<32x128xf32> to vector<32x128xbf16>
    %c0_31 = arith.constant 0 : index
    %c0_32 = arith.constant 0 : index
    %93 = vector.load %arg6[%c0_31, %c0_32] : memref<128x32xbf16, #tpu.memory_space<vmem>>, vector<128x32xbf16>
    %cst_33 = arith.constant dense<0.000000e+00> : vector<32x32xf32>
    %94 = tpu.matmul %92, %93, %cst_33 {dimension_numbers = #tpu.dot_dimension_numbers<[1], [0], [0], [1], [0, 0, 1, 1], [], []>} : vector<32x128xbf16>, vector<128x32xbf16>, vector<32x32xf32> -> vector<32x32xf32>
    %c0_34 = arith.constant 0 : index
    %c0_35 = arith.constant 0 : index
    %95 = vector.load %arg7[%c0_34, %c0_35] : memref<1x32xf32, #tpu.memory_space<vmem>>, vector<1x32xf32>
    %96 = vector.broadcast %95 : vector<1x32xf32> to vector<32x32xf32>
    %97 = arith.addf %94, %96 : vector<32x32xf32>
    %c0_36 = arith.constant 0 : index
    %c0_37 = arith.constant 0 : index
    %98 = vector.load %arg8[%c0_36, %c0_37] : memref<32x32xf32, #tpu.memory_space<vmem>>, vector<32x32xf32>
    tpu.vector_store %arg8[%c0_36, %c0_37], %97 {strides = array<i32>} : memref<32x32xf32, #tpu.memory_space<vmem>>, vector<32x32xf32>,
    return
  }
  func.func @transform_0(%arg0: i32) -> (i32, i32) {
    %c0_i32 = arith.constant 0 : i32
    %c0_i32_0 = arith.constant 0 : i32
    return %arg0, %c0_i32 : i32, i32
  }
  func.func @transform_1(%arg0: i32) -> (i32, i32) {
    %c0_i32 = arith.constant 0 : i32
    %c0_i32_0 = arith.constant 0 : i32
    %c0_i32_1 = arith.constant 0 : i32
    return %c0_i32, %c0_i32_0 : i32, i32
  }
  func.func @transform_2(%arg0: i32) -> (i32, i32) {
    %c0_i32 = arith.constant 0 : i32
    %c0_i32_0 = arith.constant 0 : i32
    %c0_i32_1 = arith.constant 0 : i32
    return %c0_i32, %c0_i32_0 : i32, i32
  }
  func.func @transform_3(%arg0: i32) -> (i32, i32) {
    %c0_i32 = arith.constant 0 : i32
    %c0_i32_0 = arith.constant 0 : i32
    %c0_i32_1 = arith.constant 0 : i32
    return %c0_i32, %c0_i32_0 : i32, i32
  }
  func.func @transform_4(%arg0: i32) -> (i32, i32) {
    %c0_i32 = arith.constant 0 : i32
    %c0_i32_0 = arith.constant 0 : i32
    %c0_i32_1 = arith.constant 0 : i32
    return %c0_i32, %c0_i32_0 : i32, i32
  }
  func.func @transform_5(%arg0: i32) -> (i32, i32) {
    %c0_i32 = arith.constant 0 : i32
    %c0_i32_0 = arith.constant 0 : i32
    %c0_i32_1 = arith.constant 0 : i32
    return %c0_i32, %c0_i32_0 : i32, i32
  }
  func.func @transform_6(%arg0: i32) -> (i32, i32) {
    %c0_i32 = arith.constant 0 : i32
    %c0_i32_0 = arith.constant 0 : i32
    %c0_i32_1 = arith.constant 0 : i32
    return %c0_i32, %c0_i32_0 : i32, i32
  }
  func.func @transform_7(%arg0: i32) -> (i32, i32) {
    %c0_i32 = arith.constant 0 : i32
    %c0_i32_0 = arith.constant 0 : i32
    return %arg0, %c0_i32 : i32, i32
  }
}

</mosaic_0001>

<llo_original>
// kernel: tpu_custom_call.1
$region0: #{tpu_custom_call.1}
  #allocation0 [shape = 'u32[]', space=smem, size = 0x4, offset = 0x4, fixed_abs, tag = 'smem constant byte address 0x4 - core index']
  #allocation1 [shape = 'u32[72,128]{1,0:T(1,128)}', space=vmem, size = 0x9000, scoped, tag = 'internal scratch']
  %s0 = inlined_call_operand.vmem [shape: bf16[32,32], index: 0, kind: input, shape index: {}]
  %s1 = inlined_call_operand.vmem [shape: bf16[32,128], index: 1, kind: input, shape index: {}]
  %s2 = inlined_call_operand.vmem [shape: f32[1,128], index: 2, kind: input, shape index: {}]
  %s3 = inlined_call_operand.vmem [shape: f32[3,128], index: 3, kind: input, shape index: {}]
  %s4 = inlined_call_operand.vmem [shape: f32[1,128], index: 4, kind: input, shape index: {}]
  %s5 = inlined_call_operand.vmem [shape: bf16[128,32], index: 5, kind: input, shape index: {}]
  %s6 = inlined_call_operand.vmem [shape: f32[1,32], index: 6, kind: input, shape index: {}]
  %s7 = inlined_call_operand.hbm [shape: f32[32,32], index: 7, kind: output, shape index: {}]
  %s8 = sld [smem:[#allocation0]]
  $region38: #{tpu_custom_call.1} parent=0
    _
  %s10 = ssub.s32 1, %s8
  %s11 = scalar_select 0, %s10, %s8
  $region1: #{tpu_custom_call.1} parent=0
    #allocation2 [shape = 'u8[16384]{0}', space=vmem, size = 0x4000, scoped, tag = 'output window, operand 0, single buffered']
    #allocation3 [shape = 's32[1]{0}', space=sflag, size = 0x4, scoped, tag = 'scoped memory for tpu_custom_call.1']
    %12 = vsyncpa [#allocation3], 0
    // Predicated region
    $region2: #{tpu_custom_call.1} parent=1 // pred_check
      _
    $region3: #{tpu_custom_call.1} parent=1 // pred_check_branch
      %14 = sbr.rel (0) target = $region5
    $region4: #{tpu_custom_call.1} parent=1 // pred_region
      _
    $region5: #{tpu_custom_call.1} parent=1 // pred_fallthru
      _
    // Predicated region
    $region6: #{tpu_custom_call.1} parent=1 // pred_check
      _
    $region7: #{tpu_custom_call.1} parent=1 // pred_check_branch
      %16 = sbr.rel (0) target = $region9
    $region8: #{tpu_custom_call.1} parent=1 // pred_region
      _
    $region9: #{tpu_custom_call.1} parent=1 // pred_fallthru
      _
    // Predicated region
    $region10: #{tpu_custom_call.1} parent=1 // pred_check
      _
    $region11: #{tpu_custom_call.1} parent=1 // pred_check_branch
      %18 = sbr.rel (0) target = $region13
    $region12: #{tpu_custom_call.1} parent=1 // pred_region
      _
    $region13: #{tpu_custom_call.1} parent=1 // pred_fallthru
      _
    // Predicated region
    $region14: #{tpu_custom_call.1} parent=1 // pred_check
      _
    $region15: #{tpu_custom_call.1} parent=1 // pred_check_branch
      %20 = sbr.rel (0) target = $region17
    $region16: #{tpu_custom_call.1} parent=1 // pred_region
      _
    $region17: #{tpu_custom_call.1} parent=1 // pred_fallthru
      _
    // Predicated region
    $region18: #{tpu_custom_call.1} parent=1 // pred_check
      _
    $region19: #{tpu_custom_call.1} parent=1 // pred_check_branch
      %22 = sbr.rel (0) target = $region21
    $region20: #{tpu_custom_call.1} parent=1 // pred_region
      _
    $region21: #{tpu_custom_call.1} parent=1 // pred_fallthru
      _
    // Predicated region
    $region22: #{tpu_custom_call.1} parent=1 // pred_check
      _
    $region23: #{tpu_custom_call.1} parent=1 // pred_check_branch
      %24 = sbr.rel (0) target = $region25
    $region24: #{tpu_custom_call.1} parent=1 // pred_region
      _
    $region25: #{tpu_custom_call.1} parent=1 // pred_fallthru
      _
    // Predicated region
    $region26: #{tpu_custom_call.1} parent=1 // pred_check
      _
    $region27: #{tpu_custom_call.1} parent=1 // pred_check_branch
      %26 = sbr.rel (0) target = $region29
    $region28: #{tpu_custom_call.1} parent=1 // pred_region
      _
    $region29: #{tpu_custom_call.1} parent=1 // pred_fallthru
      _
    %v28 = vld [vmem:[%s0] sm:$0xf]
    %v29 = vld [vmem:[%s0 + $0x4] sm:$0xf]
    %v30 = vld [vmem:[%s0 + $0x8] sm:$0xf]
    %v31 = vld [vmem:[%s0 + $0xc] sm:$0xf]
    %v32 = vld [vmem:[%s1] sm:$0xf]
    %v33 = vld [vmem:[%s1 + $0x4] sm:$0xf]
    %v34 = vld [vmem:[%s1 + $0x8] sm:$0xf]
    %v35 = vld [vmem:[%s1 + $0xc] sm:$0xf]
    %v36 = vld [vmem:[%s2] sm:$0x1]
    %v38 = vperm.slane %v36, 0
    %v44 = vunpack.c.l.b16 %v28
    %v45 = vunpack.c.l.b16 %v29
    %v46 = vunpack.c.l.b16 %v30
    %v47 = vunpack.c.l.b16 %v31
    %v48 = vpack.c.b16 %v45, %v44
    %v49 = vpack.c.b16 %v47, %v46
    %v54 = vunpack.c.l.b16 %v32
    %v55 = vunpack.c.l.b16 %v33
    %v56 = vunpack.c.l.b16 %v34
    %v57 = vunpack.c.l.b16 %v35
    %v58 = vpack.c.b16 %v55, %v54
    %v59 = vpack.c.b16 %v57, %v56
    %vm62 = vcmask 261120
    %v64 = vsel %vm62, %v48, 0
    %v67 = vsel %vm62, %v49, 0
    %69 = vmatpush.bf16.msra.mxu0 0
    %70 = vmatpush.bf16.msra.mxu0 0
    %71 = vmatpush.bf16.msra.mxu0 0
    %72 = vmatpush.bf16.msra.mxu0 0
    %73 = vmatpush.bf16.msra.mxu0 0
    %74 = vmatpush.bf16.msra.mxu0 0
    %75 = vmatpush.bf16.msra.mxu0 %v59
    %76 = vmatpush.bf16.msra.mxu0 %v58
    %77 = vmatmul.bf16.gmra.mxu0 %v64
    %v78 = vpop.f32.mrf.mxu0
    %v79 = vadd.f32 %v38, %v78
    %v80 = vpop.f32.mrf.mxu0
    %v81 = vadd.f32 %v38, %v80
    %82 = vmatmul.bf16.gmra.mxu0 %v67
    %v83 = vpop.f32.mrf.mxu0
    %v84 = vadd.f32 %v38, %v83
    %v85 = vpop.f32.mrf.mxu0
    %v86 = vadd.f32 %v38, %v85
    %87 = vdwg.mxu0
    %v88 = vlaneseq
    %v89 = vshrl.u32 %v88, 7
    %v90 = vadd.s32 %v89, 8
    %v91 = vadd.s32 %v89, 16
    %v92 = vadd.s32 %v89, 24
    %vm93 = vcmp.lt.s32.totalorder %v89, 0
    %v94 = vsub.s32 0, %v89
    %v95 = vsel %vm93, %v94, %v89
    %v96 = vshrl.u32 %v95, 4
    %v97 = vand.u32 %v95, 15
    %v98 = vsub.s32 0, %v97
    %v99 = vsel %vm93, %v98, %v97
    %vm100 = vcmp.lt.s32.totalorder %v90, 0
    %v101 = vsub.s32 0, %v90
    %v102 = vsel %vm100, %v101, %v90
    %v103 = vshrl.u32 %v102, 4
    %v104 = vand.u32 %v102, 15
    %v105 = vsub.s32 0, %v104
    %v106 = vsel %vm100, %v105, %v104
    %vm107 = vcmp.lt.s32.totalorder %v91, 0
    %v108 = vsub.s32 0, %v91
    %v109 = vsel %vm107, %v108, %v91
    %v110 = vshrl.u32 %v109, 4
    %v111 = vand.u32 %v109, 15
    %v112 = vsub.s32 0, %v111
    %v113 = vsel %vm107, %v112, %v111
    %vm114 = vcmp.lt.s32.totalorder %v92, 0
    %v115 = vsub.s32 0, %v92
    %v116 = vsel %vm114, %v115, %v92
    %v117 = vshrl.u32 %v116, 4
    %v118 = vand.u32 %v116, 15
    %v119 = vsub.s32 0, %v118
    %v120 = vsel %vm114, %v119, %v118
    %vm121 = vcmp.ne.s32.totalorder %v99, 0
    %vm122 = vcmp.ne.s32.totalorder %v106, 0
    %vm123 = vcmp.ne.s32.totalorder %v113, 0
    %vm124 = vcmp.ne.s32.totalorder %v120, 0
    %vm125 = vcmp.lt.s32.totalorder %v99, 0
    %vm126 = vcmp.lt.s32.totalorder %v106, 0
    %vm127 = vcmp.lt.s32.totalorder %v113, 0
    %vm128 = vcmp.lt.s32.totalorder %v120, 0
    %vm129 = vmand %vm125, %vm121
    %vm130 = vmand %vm126, %vm122
    %vm131 = vmand %vm127, %vm123
    %vm132 = vmand %vm128, %vm124
    %v133 = vadd.s32 %v99, 16
    %v134 = vadd.s32 %v106, 16
    %v135 = vadd.s32 %v113, 16
    %v136 = vadd.s32 %v120, 16
    %v137 = vsel %vm129, %v133, %v99
    %v138 = vsel %vm130, %v134, %v106
    %v139 = vsel %vm131, %v135, %v113
    %v140 = vsel %vm132, %v136, %v120
    %vm141 = vcmp.eq.s32.totalorder %v137, 0
    %vm142 = vcmp.eq.s32.totalorder %v138, 0
    %vm143 = vcmp.eq.s32.totalorder %v139, 0
    %vm144 = vcmp.eq.s32.totalorder %v140, 0
    %v145 = vrot.slane %v79, 7
    %v146 = vrot.slane %v81, 7
    %v147 = vrot.slane %v84, 7
    %v148 = vrot.slane %v86, 7
    %vm149 = vcmp.lt.s32.totalorder %v89, 1
    %v150 = vsel %vm149, %v147, %v148
    %v151 = vsel %vm149, %v146, %v147
    %v152 = vsel %vm149, %v145, %v146
    %v153 = vsel %vm149, %v148, %v145
    %v154 = vsel %vm141, 1, 0
    %v155 = vsel %vm142, 1, 0
    %v156 = vsel %vm143, 1, 0
    %v157 = vsel %vm144, 1, 0
    %vm158 = vcmp.eq.s32.totalorder %v154, 1
    %vm159 = vcmp.eq.s32.totalorder %v155, 1
    %vm160 = vcmp.eq.s32.totalorder %v156, 1
    %vm161 = vcmp.eq.s32.totalorder %v157, 1
    %v162 = vsel %vm158, 0.0, %v153
    %v163 = vsel %vm159, 0.0, %v152
    %v164 = vsel %vm160, 0.0, %v151
    %v165 = vsel %vm161, 0.0, %v150
    %vm166 = vcmp.eq.s32.totalorder %v137, 15
    %vm167 = vcmp.eq.s32.totalorder %v138, 15
    %vm168 = vcmp.eq.s32.totalorder %v139, 15
    %vm169 = vcmp.eq.s32.totalorder %v140, 15
    %v170 = vrot.slane %v79, 1
    %v171 = vrot.slane %v81, 1
    %v172 = vrot.slane %v84, 1
    %v173 = vrot.slane %v86, 1
    %vm174 = vcmp.lt.s32.totalorder %v89, 7
    %v175 = vsel %vm174, %v172, %v173
    %v176 = vsel %vm174, %v171, %v172
    %v177 = vsel %vm174, %v170, %v171
    %v178 = vsel %vm174, %v173, %v170
    %v179 = vsel %vm166, 1, 0
    %v180 = vsel %vm167, 1, 0
    %v181 = vsel %vm168, 1, 0
    %v182 = vsel %vm169, 1, 0
    %vm183 = vcmp.eq.s32.totalorder %v179, 1
    %vm184 = vcmp.eq.s32.totalorder %v180, 1
    %vm185 = vcmp.eq.s32.totalorder %v181, 1
    %vm186 = vcmp.eq.s32.totalorder %v182, 1
    %v187 = vsel %vm183, 0.0, %v177
    %v188 = vsel %vm184, 0.0, %v176
    %v189 = vsel %vm185, 0.0, %v175
    %v190 = vsel %vm186, 0.0, %v178
    %v191 = vld [vmem:[%s3] sm:$0x7]
    %v192 = vperm.slane %v191, 0
    %v193 = vmul.f32 %v162, %v192
    %v194 = vmul.f32 %v163, %v192
    %v195 = vmul.f32 %v164, %v192
    %v196 = vmul.f32 %v165, %v192
    %v197 = vperm.slane %v191, 1
    %v198 = vmul.f32 %v79, %v197
    %v199 = vmul.f32 %v81, %v197
    %v200 = vmul.f32 %v84, %v197
    %v201 = vmul.f32 %v86, %v197
    %v202 = vadd.f32 %v193, %v198
    %v203 = vadd.f32 %v194, %v199
    %v204 = vadd.f32 %v195, %v200
    %v205 = vadd.f32 %v196, %v201
    %v206 = vperm.slane %v191, 2
    %v207 = vmul.f32 %v187, %v206
    %v208 = vmul.f32 %v188, %v206
    %v209 = vmul.f32 %v189, %v206
    %v210 = vmul.f32 %v190, %v206
    %v211 = vadd.f32 %v202, %v207
    %v212 = vadd.f32 %v203, %v208
    %v213 = vadd.f32 %v204, %v209
    %v214 = vadd.f32 %v205, %v210
    %v215 = vld [vmem:[%s4] sm:$0x1]
    %v217 = vperm.slane %v215, 0
    %v219 = vadd.f32 %v211, %v217
    %v220 = vadd.f32 %v212, %v217
    %v221 = vadd.f32 %v213, %v217
    %v222 = vadd.f32 %v214, %v217
    %v223 = vmul.f32 %v219, 0.5
    %v224 = vmul.f32 %v220, 0.5
    %v225 = vmul.f32 %v221, 0.5
    %v226 = vmul.f32 %v222, 0.5
    %v227 = vmul.f32 %v219, 0.70710677
    %v228 = vmul.f32 %v220, 0.70710677
    %v229 = vmul.f32 %v221, 0.70710677
    %v230 = vmul.f32 %v222, 0.70710677
    %vm231 = vcmp.ge.f32.partialorder %v227, 0.0
    %vm232 = vcmp.ge.f32.partialorder %v228, 0.0
    %vm233 = vcmp.ge.f32.partialorder %v229, 0.0
    %vm234 = vcmp.ge.f32.partialorder %v230, 0.0
    %v235 = vsel %vm231, 1.0, -1.0
    %v236 = vsel %vm232, 1.0, -1.0
    %v237 = vsel %vm233, 1.0, -1.0
    %v238 = vsel %vm234, 1.0, -1.0
    %v239 = vand.u32 2147483647, %v227
    %v240 = vand.u32 2147483647, %v228
    %v241 = vand.u32 2147483647, %v229
    %v242 = vand.u32 2147483647, %v230
    %v243 = vmul.f32 %v239, 0.3275911
    %v244 = vmul.f32 %v240, 0.3275911
    %v245 = vmul.f32 %v241, 0.3275911
    %v246 = vmul.f32 %v242, 0.3275911
    %v247 = vadd.f32 %v243, 1.0
    %v248 = vadd.f32 %v244, 1.0
    %v249 = vadd.f32 %v245, 1.0
    %v250 = vadd.f32 %v246, 1.0
    %v251 = vrcp.pop %v247
    %v252 = vrcp.pop %v248
    %v253 = vrcp.pop %v249
    %v254 = vrcp.pop %v250
    %v255 = vmul.f32 %v251, 1.0614054
    %v256 = vmul.f32 %v252, 1.0614054
    %v257 = vmul.f32 %v253, 1.0614054
    %v258 = vmul.f32 %v254, 1.0614054
    %v259 = vadd.f32 %v255, -1.4531521
    %v260 = vadd.f32 %v256, -1.4531521
    %v261 = vadd.f32 %v257, -1.4531521
    %v262 = vadd.f32 %v258, -1.4531521
    %v263 = vmul.f32 %v259, %v251
    %v264 = vmul.f32 %v260, %v252
    %v265 = vmul.f32 %v261, %v253
    %v266 = vmul.f32 %v262, %v254
    %v267 = vadd.f32 %v263, 1.4214138
    %v268 = vadd.f32 %v264, 1.4214138
    %v269 = vadd.f32 %v265, 1.4214138
    %v270 = vadd.f32 %v266, 1.4214138
    %v271 = vmul.f32 %v267, %v251
    %v272 = vmul.f32 %v268, %v252
    %v273 = vmul.f32 %v269, %v253
    %v274 = vmul.f32 %v270, %v254
    %v275 = vadd.f32 %v271, -0.28449672
    %v276 = vadd.f32 %v272, -0.28449672
    %v277 = vadd.f32 %v273, -0.28449672
    %v278 = vadd.f32 %v274, -0.28449672
    %v279 = vmul.f32 %v275, %v251
    %v280 = vmul.f32 %v276, %v252
    %v281 = vmul.f32 %v277, %v253
    %v282 = vmul.f32 %v278, %v254
    %v283 = vadd.f32 %v279, 0.2548296
    %v284 = vadd.f32 %v280, 0.2548296
    %v285 = vadd.f32 %v281, 0.2548296
    %v286 = vadd.f32 %v282, 0.2548296
    %v287 = vmul.f32 %v283, %v251
    %v288 = vmul.f32 %v284, %v252
    %v289 = vmul.f32 %v285, %v253
    %v290 = vmul.f32 %v286, %v254
    %v291 = vsub.f32 0.0, %v239
    %v292 = vsub.f32 0.0, %v240
    %v293 = vsub.f32 0.0, %v241
    %v294 = vsub.f32 0.0, %v242
    %v295 = vmul.f32 %v291, %v239
    %v296 = vmul.f32 %v292, %v240
    %v297 = vmul.f32 %v293, %v241
    %v298 = vmul.f32 %v294, %v242
    %v299 = vmul.f32 %v295, 1.442695
    %v300 = vpow.pop %v299
    %v301 = vmul.f32 %v296, 1.442695
    %v302 = vpow.pop %v301
    %v303 = vmul.f32 %v297, 1.442695
    %v304 = vpow.pop %v303
    %v305 = vmul.f32 %v298, 1.442695
    %v306 = vpow.pop %v305
    %v307 = vmul.f32 %v287, %v300
    %v308 = vmul.f32 %v288, %v302
    %v309 = vmul.f32 %v289, %v304
    %v310 = vmul.f32 %v290, %v306
    %v311 = vsub.f32 1.0, %v307
    %v312 = vsub.f32 1.0, %v308
    %v313 = vsub.f32 1.0, %v309
    %v314 = vsub.f32 1.0, %v310
    %v315 = vmul.f32 %v235, %v311
    %v316 = vmul.f32 %v236, %v312
    %v317 = vmul.f32 %v237, %v313
    %v318 = vmul.f32 %v238, %v314
    %v319 = vadd.f32 %v315, 1.0
    %v320 = vadd.f32 %v316, 1.0
    %v321 = vadd.f32 %v317, 1.0
    %v322 = vadd.f32 %v318, 1.0
    %v323 = vmul.f32 %v223, %v319
    %v324 = vmul.f32 %v224, %v320
    %v325 = vmul.f32 %v225, %v321
    %v326 = vmul.f32 %v226, %v322
    %v327 = vpack.c.bf16 %v324, %v323
    %v328 = vpack.c.bf16 %v326, %v325
    %v329 = vld [vmem:[%s5] sm:$0xf]
    %v330 = vld [vmem:[%s5 + $0x4] sm:$0xf]
    %v331 = vld [vmem:[%s5 + $0x8] sm:$0xf]
    %v332 = vld [vmem:[%s5 + $0xc] sm:$0xf]
    %v333 = vld [vmem:[%s5 + $0x10] sm:$0xf]
    %v334 = vld [vmem:[%s5 + $0x14] sm:$0xf]
    %v335 = vld [vmem:[%s5 + $0x18] sm:$0xf]
    %v336 = vld [vmem:[%s5 + $0x1c] sm:$0xf]
    %v337 = vld [vmem:[%s5 + $0x20] sm:$0xf]
    %v338 = vld [vmem:[%s5 + $0x24] sm:$0xf]
    %v339 = vld [vmem:[%s5 + $0x28] sm:$0xf]
    %v340 = vld [vmem:[%s5 + $0x2c] sm:$0xf]
    %v341 = vld [vmem:[%s5 + $0x30] sm:$0xf]
    %v342 = vld [vmem:[%s5 + $0x34] sm:$0xf]
    %v343 = vld [vmem:[%s5 + $0x38] sm:$0xf]
    %v344 = vld [vmem:[%s5 + $0x3c] sm:$0xf]
    %v345 = vld [vmem:[%s6] sm:$0x1]
    %v347 = vperm.slane %v345, 0
    %v365 = vunpack.c.l.b16 %v329
    %v366 = vunpack.c.l.b16 %v330
    %v367 = vunpack.c.l.b16 %v331
    %v368 = vunpack.c.l.b16 %v332
    %v369 = vunpack.c.l.b16 %v333
    %v370 = vunpack.c.l.b16 %v334
    %v371 = vunpack.c.l.b16 %v335
    %v372 = vunpack.c.l.b16 %v336
    %v373 = vunpack.c.l.b16 %v337
    %v374 = vunpack.c.l.b16 %v338
    %v375 = vunpack.c.l.b16 %v339
    %v376 = vunpack.c.l.b16 %v340
    %v377 = vunpack.c.l.b16 %v341
    %v378 = vunpack.c.l.b16 %v342
    %v379 = vunpack.c.l.b16 %v343
    %v380 = vunpack.c.l.b16 %v344
    %v381 = vpack.c.b16 %v366, %v365
    %v382 = vpack.c.b16 %v368, %v367
    %v383 = vpack.c.b16 %v370, %v369
    %v384 = vpack.c.b16 %v372, %v371
    %v385 = vpack.c.b16 %v374, %v373
    %v386 = vpack.c.b16 %v376, %v375
    %v387 = vpack.c.b16 %v378, %v377
    %v388 = vpack.c.b16 %v380, %v379
    %397 = vmatpush.bf16.msra.mxu0 %v388
    %398 = vmatpush.bf16.msra.mxu0 %v387
    %399 = vmatpush.bf16.msra.mxu0 %v386
    %400 = vmatpush.bf16.msra.mxu0 %v385
    %401 = vmatpush.bf16.msra.mxu0 %v384
    %402 = vmatpush.bf16.msra.mxu0 %v383
    %403 = vmatpush.bf16.msra.mxu0 %v382
    %404 = vmatpush.bf16.msra.mxu0 %v381
    %405 = vmatmul.bf16.gmra.mxu0 %v327
    %v406 = vpop.f32.mrf.mxu0
    %v407 = vadd.f32 %v347, %v406
    %v408 = vpop.f32.mrf.mxu0
    %v409 = vadd.f32 %v347, %v408
    %410 = vmatmul.bf16.gmra.mxu0 %v328
    %v411 = vpop.f32.mrf.mxu0
    %v412 = vadd.f32 %v347, %v411
    %v413 = vpop.f32.mrf.mxu0
    %v414 = vadd.f32 %v347, %v413
    %415 = vdwg.mxu0
    %416 = vst.msk [vmem:[#allocation2] sm:$0xff] %vm62, %v407
    %417 = vst.msk [vmem:[#allocation2 + $0x8] sm:$0xff] %vm62, %v409
    %418 = vst.msk [vmem:[#allocation2 + $0x10] sm:$0xff] %vm62, %v412
    %419 = vst.msk [vmem:[#allocation2 + $0x18] sm:$0xff] %vm62, %v414
    // Predicated region
    $region30: #{tpu_custom_call.1} parent=1 // pred_check
      _
    $region31: #{tpu_custom_call.1} parent=1 // pred_check_branch
      %421 = sbr.rel (0) target = $region33
    $region32: #{tpu_custom_call.1} parent=1 // pred_region
      %423 = vsyncadd [#allocation3], 0
      %s424 = sshll.u32 [#allocation2], 4
      %s425 = int_to_ptr.vmem [resolvable:$true] %s424
      %s426 = sshll.u32 %s7, 4
      %s427 = int_to_ptr.hbm [resolvable:$true] %s426
      %432 = dma.vmem_to_hbm [thread:$0]  %s425, 512, %s427, [#allocation3], 128, 128, 8
    $region33: #{tpu_custom_call.1} parent=1 // pred_fallthru
      _
    // Predicated region
    $region34: #{tpu_custom_call.1} parent=1 // pred_check
      _
    $region35: #{tpu_custom_call.1} parent=1 // pred_check_branch
      %434 = sbr.rel (0) target = $region37
    $region36: #{tpu_custom_call.1} parent=1 // pred_region
      %436 = dma.done [#allocation3], 512
    $region37: #{tpu_custom_call.1} parent=1 // pred_fallthru
      _
    %437 = vsyncpa [#allocation3], 1

</llo_original>
